<compile_context>
chip_gen: v7x
topology: tpu7x:2x2x1
jax: 0.10.0
libtpu: 0.0.40
codegen_flags: <defaults>
</compile_context>

<pallas_src>
import jax
import jax.numpy as jnp
from jax.experimental import pallas as pl
from jax.experimental.pallas import tpu as pltpu


_LANES = 128
_MAX_COLS = 4096                        # prefer wide, lane-dense slabs
_MIN_SUBLANE = {4: 8, 2: 16, 1: 32}     # itemsize -> min sublane rows
_DEFAULT_BLOCK_BYTES = 4 * 1024 * 1024  # v5e / v6e sweet spot
_V7X_BLOCK_BYTES = 6 * 1024 * 1024      # v7x: 3.2 TB/s HBM needs bigger steps
_AWKWARD_BLOCK_COLS = 64 * 1024         # fallback path: (1, 64K)-element blocks


def _tanh_kernel(x_ref, o_ref):
    # Elementwise tanh on the whole VMEM tile (EUP path; kernel is HBM-bound).
    # NOTE: on partial edge blocks the out-of-bounds lanes hold uninitialized
    # VMEM; tanh is bounded and trap-free there and the write-back is masked,
    # so this is safe.  Do not add ops here that can trap or leak NaN/Inf from
    # the invalid lanes into valid ones (e.g. cross-lane reductions).
    o_ref[...] = jnp.tanh(x_ref[...])


def _target_block_bytes():
    """Per-block byte target, scaled by chip generation when detectable."""
    try:
        info = pltpu.get_tpu_info()
        name = ""
        for attr in ("chip_version", "version", "chip_name", "name"):
            val = getattr(info, attr, None)
            if val is not None:
                name = str(val)
                break
        if "7" in name:                 # v7x: bigger steps to hide per-step cost
            return _V7X_BLOCK_BYTES
    except Exception:
        pass
    return _DEFAULT_BLOCK_BYTES


def _pick_slab(n):
    """(rows, cols): rows*cols == n, cols a multiple of 128, prefer wide.
    Caller guarantees n % 128 == 0, so cols=128 always succeeds."""
    max_cols = min(n, _MAX_COLS)
    max_cols -= max_cols % _LANES
    for cols in range(max_cols, _LANES - 1, -_LANES):
        if n % cols == 0:
            return n // cols, cols
    return n // _LANES, _LANES


def _pick_block_rows(rows, cols, itemsize, sub, target_bytes):
    """Block rows: ~target_bytes per block, multiple of the dtype's minimum
    sublane tile (or the full row extent, always legal), and -- whenever the
    row extent allows -- at least 2 grid steps so the 'parallel' grid axis
    can shard across both TensorCores on v7x."""
    br = max(1, target_bytes // (cols * itemsize))
    br = max(sub, (br // sub) * sub)
    if br > rows:
        br = rows
    steps = -(-rows // br)
    if steps < 2 and rows >= 2 * sub:
        br = max(sub, ((rows // 2) // sub) * sub)
    return br


def tanh_pallas(x):
    """Elementwise tanh via Pallas. Accepts any shape; preserves shape/dtype."""
    orig_shape = x.shape
    dtype = x.dtype
    if not jnp.issubdtype(dtype, jnp.floating):
        # torch's Tensor.tanh() rejects integer dtypes as well.
        raise TypeError(f"tanh_pallas expects a floating dtype, got {dtype}")
    n = x.size
    if n == 0:
        return x

    itemsize = jnp.dtype(dtype).itemsize
    sub = _MIN_SUBLANE.get(itemsize, 8)
    cost = pl.CostEstimate(flops=0, transcendentals=n,
                           bytes_accessed=2 * n * itemsize)

    if n % _LANES == 0:
        # Common path: zero-copy reshape into a lane-dense (rows, cols) slab.
        rows, cols = _pick_slab(n)
        block_rows = _pick_block_rows(rows, cols, itemsize, sub,
                                      _target_block_bytes())
        grid = (-(-rows // block_rows),)
        block_bytes = block_rows * cols * itemsize
        # Double-buffered in+out = 4x block; add headroom for Mosaic scratch.
        vmem_limit = int(min(100 << 20, max(16 << 20,
                                            4 * block_bytes + (8 << 20))))
        x2 = jnp.reshape(x, (rows, cols))
        out2 = pl.pallas_call(
            _tanh_kernel,
            out_shape=jax.ShapeDtypeStruct((rows, cols), dtype),
            grid=grid,
            in_specs=[pl.BlockSpec((block_rows, cols), lambda i: (i, 0))],
            out_specs=pl.BlockSpec((block_rows, cols), lambda i: (i, 0)),
            compiler_params=pltpu.CompilerParams(
                dimension_semantics=("parallel",),
                vmem_limit_bytes=vmem_limit),
            cost_estimate=cost,
        )(x2)
        return jnp.reshape(out2, orig_shape)

    # Awkward sizes (n % 128 != 0): zero-copy (1, n) view, cdiv grid over the
    # lane dim; the partial last block is masked by Pallas on write-back.
    # No jnp.pad and no trailing slice -> no extra HBM passes for this
    # purely memory-bound op.
    block_cols = min(n, _AWKWARD_BLOCK_COLS)   # full dim if small (always legal)
    grid = (-(-n // block_cols),)
    x2 = jnp.reshape(x, (1, n))
    out2 = pl.pallas_call(
        _tanh_kernel,
        out_shape=jax.ShapeDtypeStruct((1, n), dtype),
        grid=grid,
        in_specs=[pl.BlockSpec((1, block_cols), lambda i: (0, i))],
        out_specs=pl.BlockSpec((1, block_cols), lambda i: (0, i)),
        compiler_params=pltpu.CompilerParams(
            dimension_semantics=("parallel",),
            vmem_limit_bytes=32 << 20),   # generous: (1, X) tiles pad sublanes
        cost_estimate=cost,
    )(x2)
    return jnp.reshape(out2, orig_shape)
    # TODO(synk): backward() of the PyTorch module (sech^2(x) * dx) is autograd
    # bookkeeping and is intentionally not part of this forward-pass kernel.


if __name__ == "__main__":
    key = jax.random.PRNGKey(0)
    # NCHW input like the PyTorch activation would see: batch=2, C=4, 16x16.
    x = jax.random.normal(key, (2, 4, 16, 16), dtype=jnp.float32)

    y = jax.block_until_ready(tanh_pallas(x))
    ref = jnp.tanh(x)
    assert y.shape == x.shape and y.dtype == x.dtype
    assert jnp.allclose(y, ref, atol=1e-5, rtol=1e-5), "mismatch vs jnp.tanh"

    # Exercise the awkward-size path (numel % 128 != 0): zero-copy fallback.
    x_odd = jax.random.normal(jax.random.PRNGKey(1), (3, 5, 7),
                              dtype=jnp.float32)
    y_odd = jax.block_until_ready(tanh_pallas(x_odd))
    assert y_odd.shape == x_odd.shape and y_odd.dtype == x_odd.dtype
    assert jnp.allclose(y_odd, jnp.tanh(x_odd), atol=1e-5, rtol=1e-5)

    print("KERNEL_OK")
</pallas_src>

<mosaic_0001>
module attributes {stable_mosaic.version = 11 : i64} {
  func.func @_tanh_kernel(%arg0: i32, %arg1: memref<1x2048xf32, #tpu.memory_space<vmem>>, %arg2: memref<1x2048xf32, #tpu.memory_space<vmem>>) attributes {dimension_semantics = [#tpu.dimension_semantics<parallel>], iteration_bounds = array<i64: 1>, scalar_prefetch = 0 : i64, scratch_operands = 0 : i64, tpu.core_type = #tpu.core_type<tc>, window_params = [{transform_indices = @transform_0, window_bounds = array<i64: 1, 2048>}, {transform_indices = @transform_1, window_bounds = array<i64: 1, 2048>}]} {
    %c0 = arith.constant 0 : index
    %c0_0 = arith.constant 0 : index
    %0 = vector.load %arg1[%c0, %c0_0] : memref<1x2048xf32, #tpu.memory_space<vmem>>, vector<1x2048xf32>
    %1 = math.tanh %0 : vector<1x2048xf32>
    %c0_1 = arith.constant 0 : index
    %c0_2 = arith.constant 0 : index
    %2 = vector.load %arg2[%c0_1, %c0_2] : memref<1x2048xf32, #tpu.memory_space<vmem>>, vector<1x2048xf32>
    tpu.vector_store %arg2[%c0_1, %c0_2], %1 {strides = array<i32>} : memref<1x2048xf32, #tpu.memory_space<vmem>>, vector<1x2048xf32>,
    return
  }
  func.func @transform_0(%arg0: i32) -> (i32, i32) {
    %c0_i32 = arith.constant 0 : i32
    %c0_i32_0 = arith.constant 0 : i32
    return %arg0, %c0_i32 : i32, i32
  }
  func.func @transform_1(%arg0: i32) -> (i32, i32) {
    %c0_i32 = arith.constant 0 : i32
    %c0_i32_0 = arith.constant 0 : i32
    return %arg0, %c0_i32 : i32, i32
  }
}

</mosaic_0001>

<llo_original>
// kernel: tpu_custom_call.1
$region0: #{tpu_custom_call.1}
  #allocation0 [shape = 'u32[]', space=smem, size = 0x4, offset = 0x4, fixed_abs, tag = 'smem constant byte address 0x4 - core index']
  #allocation1 [shape = 'u32[144,128]{1,0:T(1,128)}', space=vmem, size = 0x12000, scoped, tag = 'internal scratch']
  %s0 = inlined_call_operand.hbm [shape: f32[1,2048], index: 0, kind: input, shape index: {}]
  %s1 = inlined_call_operand.hbm [shape: f32[1,2048], index: 1, kind: output, shape index: {}]
  %s2 = sld [smem:[#allocation0]]
  $region18: #{tpu_custom_call.1} parent=0
    _
  %s4 = ssub.s32 1, %s2
  %s5 = scalar_select 0, %s4, %s2
  $region1: #{tpu_custom_call.1} parent=0
    #allocation2 [shape = 'u8[8192]{0}', space=vmem, size = 0x2000, scoped, tag = 'input window, operand 0, single buffered']
    #allocation3 [shape = 's32[1]{0}', space=sflag, size = 0x4, scoped, tag = 'scoped memory for tpu_custom_call.1']
    #allocation4 [shape = 's32[1]{0}', space=sflag, size = 0x4, scoped, tag = 'scoped memory for tpu_custom_call.1']
    #allocation5 [shape = 'u8[8192]{0}', space=vmem, size = 0x2000, scoped, tag = 'output window, operand 0, single buffered']
    %6 = vsyncpa [#allocation3], 0
    %7 = vsyncpa [#allocation4], 0
    // Predicated region
    $region2: #{tpu_custom_call.1} parent=1 // pred_check
      _
    $region3: #{tpu_custom_call.1} parent=1 // pred_check_branch
      %9 = sbr.rel (0) target = $region5
    $region4: #{tpu_custom_call.1} parent=1 // pred_region
      %s11 = ssub.s32 256, 256
      %12 = vsyncadd [#allocation3], %s11
      %s14 = sshll.u32 [#allocation2], 4
      %s15 = int_to_ptr.vmem [resolvable:$true] %s14
      %17 = dma.hbm_to_vmem [thread:$0]  %s0, 256, %s15, [#allocation3]
    $region5: #{tpu_custom_call.1} parent=1 // pred_fallthru
      _
    // Predicated region
    $region6: #{tpu_custom_call.1} parent=1 // pred_check
      _
    $region7: #{tpu_custom_call.1} parent=1 // pred_check_branch
      %19 = sbr.rel (0) target = $region9
    $region8: #{tpu_custom_call.1} parent=1 // pred_region
      %20 = dma.done [#allocation3], 256
    $region9: #{tpu_custom_call.1} parent=1 // pred_fallthru
      _
    %v21 = vld [vmem:[#allocation2] sm:$0xff]
    %v22 = vld [vmem:[#allocation2 + $0x8] sm:$0xff]
    %v23 = vtanh.pop %v21
    %v24 = vtanh.pop %v22
    %25 = vst [vmem:[#allocation5] sm:$0xff] %v23
    %26 = vst [vmem:[#allocation5 + $0x8] sm:$0xff] %v24
    // Predicated region
    $region10: #{tpu_custom_call.1} parent=1 // pred_check
      _
    $region11: #{tpu_custom_call.1} parent=1 // pred_check_branch
      %28 = sbr.rel (0) target = $region13
    $region12: #{tpu_custom_call.1} parent=1 // pred_region
      %s30 = ssub.s32 256, 256
      %31 = vsyncadd [#allocation4], %s30
      %s33 = sshll.u32 [#allocation5], 4
      %s34 = int_to_ptr.vmem [resolvable:$true] %s33
      %36 = dma.vmem_to_hbm [thread:$0]  %s34, 256, %s1, [#allocation4]
    $region13: #{tpu_custom_call.1} parent=1 // pred_fallthru
      _
    // Predicated region
    $region14: #{tpu_custom_call.1} parent=1 // pred_check
      _
    $region15: #{tpu_custom_call.1} parent=1 // pred_check_branch
      %38 = sbr.rel (0) target = $region17
    $region16: #{tpu_custom_call.1} parent=1 // pred_region
      %39 = dma.done [#allocation4], 256
    $region17: #{tpu_custom_call.1} parent=1 // pred_fallthru
      _
    %40 = vsyncpa [#allocation3], 1
    %41 = vsyncpa [#allocation4], 1

</llo_original>
